<compile_context>
chip_gen: v5e
topology: v5e:2x2
jax: 0.10.0
libtpu: 0.0.40
codegen_flags: <defaults>
</compile_context>

<pallas_src>
import math
import functools

import jax
import jax.numpy as jnp
from jax.experimental import pallas as pl
from jax.experimental.pallas import tpu as pltpu


def _round_up(x, m):
    return ((x + m - 1) // m) * m


def _vmem_capacity_bytes():
    """Physical per-core VMEM; conservative 64 MiB fallback (safe on all gens)."""
    try:
        cap = getattr(pltpu.get_tpu_info(), "vmem_capacity_bytes", None)
        if cap:
            return int(cap)
    except Exception:
        pass
    return 64 << 20


def _tensorcores_per_chip():
    """2 on v7x (need >=2 grid steps to feed both cores), else 1."""
    try:
        kind = jax.devices()[0].device_kind.lower()
    except Exception:
        return 1
    if "v7" in kind or "7x" in kind:
        return 2
    return 1


def _lora_kernel(x_ref, a_t_ref, b_t_ref, o_ref, *, scale):
    # x_ref:   (tm, in_dim)       row tile of the flattened input
    # a_t_ref: (in_dim, rank_p)   full A^T (rank padded to the sublane multiple)
    # b_t_ref: (rank_p, out_dim)  full B^T
    # o_ref:   (tm, out_dim)
    h = jnp.dot(x_ref[...], a_t_ref[...], preferred_element_type=jnp.float32)
    out = jnp.dot(h.astype(b_t_ref.dtype), b_t_ref[...],
                  preferred_element_type=jnp.float32)
    # Scale the f32 accumulator (matches PyTorch, which scales the f32 output).
    o_ref[...] = (out * scale).astype(o_ref.dtype)


def lora_forward(x, lora_A, lora_B, alpha=1.0, *, tm=None, compute_dtype=None):
    """x: (..., in_dim), lora_A: (rank, in_dim), lora_B: (out_dim, rank)."""
    rank, in_dim = lora_A.shape
    out_dim, rank_b = lora_B.shape
    assert rank_b == rank
    scale = float(alpha) / float(rank)

    cd = jnp.dtype(compute_dtype) if compute_dtype is not None else jnp.dtype(x.dtype)
    out_dtype = cd
    itemsize = cd.itemsize
    sublane = {4: 8, 2: 16, 1: 32}.get(itemsize, 8)

    lead_shape = x.shape[:-1]
    M = 1
    for d in lead_shape:
        M *= int(d)
    x2d = x.reshape(M, in_dim).astype(cd)

    # rank padded only to the sublane multiple (tiny, zero-filled -> exact).
    rank_p = _round_up(rank, sublane)
    a_t = lora_A.T.astype(cd)                  # (in_dim, rank)
    b_t = lora_B.T.astype(cd)                  # (rank, out_dim)
    if rank_p != rank:
        a_t = jnp.pad(a_t, ((0, 0), (0, rank_p - rank)))
        b_t = jnp.pad(b_t, ((0, rank_p - rank), (0, 0)))

    # ---- row-tile selection under a generation-aware VMEM budget -----------
    weight_bytes = (in_dim * rank_p + rank_p * out_dim) * itemsize

    def working_set(tm_):
        return (2 * weight_bytes                           # weights (worst case 2 bufs)
                + 2 * tm_ * in_dim * itemsize              # x tile, double-buffered
                + 2 * tm_ * out_dim * out_dtype.itemsize   # out tile, double-buffered
                + tm_ * (rank_p + out_dim) * 4)            # f32 intermediates (h + pre-cast)

    vmem_cap = _vmem_capacity_bytes()
    if tm is None:
        budget = int(0.70 * vmem_cap)   # ~44 MiB on v7x, ~89 MiB on v5e/v6e
        tm = 512
        while tm > sublane and working_set(tm) > budget:
            tm //= 2
        tm = max(tm, sublane)
    tm = _round_up(int(tm), sublane)

    # Don't tile wider than needed; on v7x ensure >=1 grid step per TensorCore.
    cores = _tensorcores_per_chip()
    tm = min(tm, max(sublane, _round_up(pl.cdiv(M, cores), sublane)))

    grid = (pl.cdiv(M, tm),)   # partial last block handled by masked stores

    vmem_limit = int(min(max(working_set(tm) + (8 << 20), 32 << 20),
                         int(0.875 * vmem_cap)))

    # Cost estimate with the TRUE shapes (not padded).
    cost = pl.CostEstimate(
        flops=int(2 * M * rank * (in_dim + out_dim)),
        transcendentals=0,
        bytes_accessed=int(M * in_dim * itemsize
                           + M * out_dim * out_dtype.itemsize
                           + weight_bytes),
    )

    kernel = functools.partial(_lora_kernel, scale=scale)

    def build(single_buffer_weights):
        if single_buffer_weights:
            # Grid-invariant weights only need a single VMEM buffer.
            w_a_spec = pl.BlockSpec((in_dim, rank_p), lambda i: (0, 0),
                                    pipeline_mode=pl.Buffered(1))
            w_b_spec = pl.BlockSpec((rank_p, out_dim), lambda i: (0, 0),
                                    pipeline_mode=pl.Buffered(1))
        else:
            w_a_spec = pl.BlockSpec((in_dim, rank_p), lambda i: (0, 0))
            w_b_spec = pl.BlockSpec((rank_p, out_dim), lambda i: (0, 0))
        return pl.pallas_call(
            kernel,
            out_shape=jax.ShapeDtypeStruct((M, out_dim), out_dtype),
            grid_spec=pltpu.PrefetchScalarGridSpec(
                num_scalar_prefetch=0,
                grid=grid,
                in_specs=[
                    pl.BlockSpec((tm, in_dim), lambda i: (i, 0)),
                    w_a_spec,
                    w_b_spec,
                ],
                out_specs=pl.BlockSpec((tm, out_dim), lambda i: (i, 0)),
            ),
            compiler_params=pltpu.CompilerParams(
                dimension_semantics=("parallel",),
                vmem_limit_bytes=vmem_limit,
            ),
            cost_estimate=cost,
        )

    try:
        out2d = build(single_buffer_weights=True)(x2d, a_t, b_t)
    except Exception:
        # Fallback if pipeline_mode=pl.Buffered(1) is unsupported in this env.
        out2d = build(single_buffer_weights=False)(x2d, a_t, b_t)

    return out2d.reshape(*lead_shape, out_dim)


if __name__ == "__main__":
    # Small shapes consistent with the module: (batch, seq, in_dim) -> out_dim
    batch, seq, in_dim, out_dim, rank, alpha = 2, 8, 32, 32, 4, 1.0

    key = jax.random.PRNGKey(0)
    kx, ka, kb = jax.random.split(key, 3)

    # lora_A follows kaiming_uniform_(a=sqrt(5)): U(-1/sqrt(in_dim), 1/sqrt(in_dim)).
    bound = 1.0 / math.sqrt(in_dim)
    lora_A = jax.random.uniform(ka, (rank, in_dim), jnp.float32, -bound, bound)
    # NOTE: the PyTorch module zero-inits lora_B (output would be identically 0);
    # small deterministic values are used so the kernel compute is actually
    # exercised and checkable.
    lora_B = jax.random.uniform(kb, (out_dim, rank), jnp.float32, -0.1, 0.1)

    x = jax.random.normal(kx, (batch, seq, in_dim), jnp.float32)

    out = lora_forward(x, lora_A, lora_B, alpha)
    out = jax.block_until_ready(out)

    # Pure-JAX reference (same einsum contraction as the PyTorch forward).
    ref = jnp.einsum("...d,rd->...r", x, lora_A)
    ref = jnp.einsum("...r,or->...o", ref, lora_B) * (alpha / rank)

    assert out.shape == (batch, seq, out_dim)
    assert jnp.allclose(out, ref, atol=1e-5, rtol=1e-5)
    print("KERNEL_OK")
</pallas_src>

<mosaic_0001>
module attributes {stable_mosaic.version = 11 : i64} {
  func.func @_lora_kernel(%arg0: i32, %arg1: memref<16x32xf32, #tpu.memory_space<vmem>>, %arg2: memref<32x8xf32, #tpu.memory_space<vmem>>, %arg3: memref<8x32xf32, #tpu.memory_space<vmem>>, %arg4: memref<16x32xf32, #tpu.memory_space<vmem>>) attributes {dimension_semantics = [#tpu.dimension_semantics<parallel>], iteration_bounds = array<i64: 1>, scalar_prefetch = 0 : i64, scratch_operands = 0 : i64, tpu.core_type = #tpu.core_type<tc>, window_params = [{transform_indices = @transform_0, window_bounds = array<i64: 16, 32>}, {pipeline_mode = #tpu.pipeline_mode<synchronous>, transform_indices = @transform_1, window_bounds = array<i64: 32, 8>}, {pipeline_mode = #tpu.pipeline_mode<synchronous>, transform_indices = @transform_2, window_bounds = array<i64: 8, 32>}, {transform_indices = @transform_3, window_bounds = array<i64: 16, 32>}]} {
    %c0 = arith.constant 0 : index
    %c0_0 = arith.constant 0 : index
    %0 = vector.load %arg1[%c0, %c0_0] : memref<16x32xf32, #tpu.memory_space<vmem>>, vector<16x32xf32>
    %c0_1 = arith.constant 0 : index
    %c0_2 = arith.constant 0 : index
    %1 = vector.load %arg2[%c0_1, %c0_2] : memref<32x8xf32, #tpu.memory_space<vmem>>, vector<32x8xf32>
    %cst = arith.constant dense<0.000000e+00> : vector<16x8xf32>
    %2 = tpu.matmul %0, %1, %cst {dimension_numbers = #tpu.dot_dimension_numbers<[1], [0], [0], [1], [0, 0, 1, 1], [], []>} : vector<16x32xf32>, vector<32x8xf32>, vector<16x8xf32> -> vector<16x8xf32>
    %c0_3 = arith.constant 0 : index
    %c0_4 = arith.constant 0 : index
    %3 = vector.load %arg3[%c0_3, %c0_4] : memref<8x32xf32, #tpu.memory_space<vmem>>, vector<8x32xf32>
    %cst_5 = arith.constant dense<0.000000e+00> : vector<16x32xf32>
    %4 = tpu.matmul %2, %3, %cst_5 {dimension_numbers = #tpu.dot_dimension_numbers<[1], [0], [0], [1], [0, 0, 1, 1], [], []>} : vector<16x8xf32>, vector<8x32xf32>, vector<16x32xf32> -> vector<16x32xf32>
    %cst_6 = arith.constant 2.500000e-01 : f32
    %5 = vector.broadcast %cst_6 : f32 to vector<16x32xf32>
    %6 = arith.mulf %4, %5 : vector<16x32xf32>
    %c0_7 = arith.constant 0 : index
    %c0_8 = arith.constant 0 : index
    %7 = vector.load %arg4[%c0_7, %c0_8] : memref<16x32xf32, #tpu.memory_space<vmem>>, vector<16x32xf32>
    tpu.vector_store %arg4[%c0_7, %c0_8], %6 {strides = array<i32>} : memref<16x32xf32, #tpu.memory_space<vmem>>, vector<16x32xf32>,
    return
  }
  func.func @transform_0(%arg0: i32) -> (i32, i32) {
    %c0_i32 = arith.constant 0 : i32
    %c0_i32_0 = arith.constant 0 : i32
    return %arg0, %c0_i32 : i32, i32
  }
  func.func @transform_1(%arg0: i32) -> (i32, i32) {
    %c0_i32 = arith.constant 0 : i32
    %c0_i32_0 = arith.constant 0 : i32
    %c0_i32_1 = arith.constant 0 : i32
    return %c0_i32, %c0_i32_0 : i32, i32
  }
  func.func @transform_2(%arg0: i32) -> (i32, i32) {
    %c0_i32 = arith.constant 0 : i32
    %c0_i32_0 = arith.constant 0 : i32
    %c0_i32_1 = arith.constant 0 : i32
    return %c0_i32, %c0_i32_0 : i32, i32
  }
  func.func @transform_3(%arg0: i32) -> (i32, i32) {
    %c0_i32 = arith.constant 0 : i32
    %c0_i32_0 = arith.constant 0 : i32
    return %arg0, %c0_i32 : i32, i32
  }
}

module attributes {stable_mosaic.version = 11 : i64} {
  func.func @_lora_kernel(%arg0: i32, %arg1: memref<16x32xf32, #tpu.memory_space<vmem>>, %arg2: memref<32x8xf32, #tpu.memory_space<vmem>>, %arg3: memref<8x32xf32, #tpu.memory_space<vmem>>, %arg4: memref<16x32xf32, #tpu.memory_space<vmem>>) attributes {dimension_semantics = [#tpu.dimension_semantics<parallel>], iteration_bounds = array<i64: 1>, scalar_prefetch = 0 : i64, scratch_operands = 0 : i64, tpu.core_type = #tpu.core_type<tc>, window_params = [{transform_indices = @transform_0, window_bounds = array<i64: 16, 32>}, {pipeline_mode = #tpu.pipeline_mode<synchronous>, transform_indices = @transform_1, window_bounds = array<i64: 32, 8>}, {pipeline_mode = #tpu.pipeline_mode<synchronous>, transform_indices = @transform_2, window_bounds = array<i64: 8, 32>}, {transform_indices = @transform_3, window_bounds = array<i64: 16, 32>}]} {
    %c0 = arith.constant 0 : index
    %c0_0 = arith.constant 0 : index
    %0 = vector.load %arg1[%c0, %c0_0] : memref<16x32xf32, #tpu.memory_space<vmem>>, vector<16x32xf32>
    %c0_1 = arith.constant 0 : index
    %c0_2 = arith.constant 0 : index
    %1 = vector.load %arg2[%c0_1, %c0_2] : memref<32x8xf32, #tpu.memory_space<vmem>>, vector<32x8xf32>
    %cst = arith.constant dense<0.000000e+00> : vector<16x8xf32>
    %2 = tpu.matmul %0, %1, %cst {dimension_numbers = #tpu.dot_dimension_numbers<[1], [0], [0], [1], [0, 0, 1, 1], [], []>} : vector<16x32xf32>, vector<32x8xf32>, vector<16x8xf32> -> vector<16x8xf32>
    %c0_3 = arith.constant 0 : index
    %c0_4 = arith.constant 0 : index
    %3 = vector.load %arg3[%c0_3, %c0_4] : memref<8x32xf32, #tpu.memory_space<vmem>>, vector<8x32xf32>
    %cst_5 = arith.constant dense<0.000000e+00> : vector<16x32xf32>
    %4 = tpu.matmul %2, %3, %cst_5 {dimension_numbers = #tpu.dot_dimension_numbers<[1], [0], [0], [1], [0, 0, 1, 1], [], []>} : vector<16x8xf32>, vector<8x32xf32>, vector<16x32xf32> -> vector<16x32xf32>
    %cst_6 = arith.constant 2.500000e-01 : f32
    %5 = vector.broadcast %cst_6 : f32 to vector<16x32xf32>
    %6 = arith.mulf %4, %5 : vector<16x32xf32>
    %c0_7 = arith.constant 0 : index
    %c0_8 = arith.constant 0 : index
    %7 = vector.load %arg4[%c0_7, %c0_8] : memref<16x32xf32, #tpu.memory_space<vmem>>, vector<16x32xf32>
    tpu.vector_store %arg4[%c0_7, %c0_8], %6 {strides = array<i32>} : memref<16x32xf32, #tpu.memory_space<vmem>>, vector<16x32xf32>,
    return
  }
  func.func @transform_0(%arg0: i32) -> (i32, i32) {
    %c0_i32 = arith.constant 0 : i32
    %c0_i32_0 = arith.constant 0 : i32
    return %arg0, %c0_i32 : i32, i32
  }
  func.func @transform_1(%arg0: i32) -> (i32, i32) {
    %c0_i32 = arith.constant 0 : i32
    %c0_i32_0 = arith.constant 0 : i32
    %c0_i32_1 = arith.constant 0 : i32
    return %c0_i32, %c0_i32_0 : i32, i32
  }
  func.func @transform_2(%arg0: i32) -> (i32, i32) {
    %c0_i32 = arith.constant 0 : i32
    %c0_i32_0 = arith.constant 0 : i32
    %c0_i32_1 = arith.constant 0 : i32
    return %c0_i32, %c0_i32_0 : i32, i32
  }
  func.func @transform_3(%arg0: i32) -> (i32, i32) {
    %c0_i32 = arith.constant 0 : i32
    %c0_i32_0 = arith.constant 0 : i32
    return %arg0, %c0_i32 : i32, i32
  }
}

</mosaic_0001>

<llo_original>
// kernel: tpu_custom_call.1
$region0: #{tpu_custom_call.1}
  #allocation0 [shape = 'u32[]', space=smem, size = 0x4, offset = 0x4, fixed_abs, tag = 'smem constant byte address 0x4 - core index']
  #allocation1 [shape = 'u32[72,128]{1,0:T(1,128)}', space=vmem, size = 0x9000, scoped, tag = 'internal scratch']
  %s0 = inlined_call_operand.vmem [shape: f32[16,32], index: 0, kind: input, shape index: {}]
  %s1 = inlined_call_operand.vmem [shape: f32[32,8], index: 1, kind: input, shape index: {}]
  %s2 = inlined_call_operand.vmem [shape: f32[8,32], index: 2, kind: input, shape index: {}]
  %s3 = inlined_call_operand.hbm [shape: f32[16,32], index: 3, kind: output, shape index: {}]
  %s4 = sld [smem:[#allocation0]]
  $region22: #{tpu_custom_call.1} parent=0
    _
  %s6 = ssub.s32 1, %s4
  %s7 = scalar_select 0, %s6, %s4
  $region1: #{tpu_custom_call.1} parent=0
    #allocation2 [shape = 'u8[8192]{0}', space=vmem, size = 0x2000, scoped, tag = 'output window, operand 0, single buffered']
    #allocation3 [shape = 's32[1]{0}', space=sflag, size = 0x4, scoped, tag = 'scoped memory for tpu_custom_call.1']
    %8 = vsyncpa [#allocation3], 0
    // Predicated region
    $region2: #{tpu_custom_call.1} parent=1 // pred_check
      _
    $region3: #{tpu_custom_call.1} parent=1 // pred_check_branch
      %10 = sbr.rel (0) target = $region5
    $region4: #{tpu_custom_call.1} parent=1 // pred_region
      _
    $region5: #{tpu_custom_call.1} parent=1 // pred_fallthru
      _
    // Predicated region
    $region6: #{tpu_custom_call.1} parent=1 // pred_check
      _
    $region7: #{tpu_custom_call.1} parent=1 // pred_check_branch
      %12 = sbr.rel (0) target = $region9
    $region8: #{tpu_custom_call.1} parent=1 // pred_region
      _
    $region9: #{tpu_custom_call.1} parent=1 // pred_fallthru
      _
    // Predicated region
    $region10: #{tpu_custom_call.1} parent=1 // pred_check
      _
    $region11: #{tpu_custom_call.1} parent=1 // pred_check_branch
      %14 = sbr.rel (0) target = $region13
    $region12: #{tpu_custom_call.1} parent=1 // pred_region
      _
    $region13: #{tpu_custom_call.1} parent=1 // pred_fallthru
      _
    %v15 = vld [vmem:[%s0] sm:$0xff]
    %v16 = vld [vmem:[%s0 + $0x8] sm:$0xff]
    %v17 = vld [vmem:[%s1] sm:$0xff]
    %v18 = vld [vmem:[%s1 + $0x8] sm:$0xff]
    %v19 = vld [vmem:[%s1 + $0x10] sm:$0xff]
    %v20 = vld [vmem:[%s1 + $0x18] sm:$0xff]
    %vm21 = vcmask 261120
    %v23 = vsel %vm21, %v15, 0
    %v26 = vsel %vm21, %v16, 0
    %28 = vmatpush.msra.mxu0 0.0
    %29 = vmatpush.msra.mxu0 0.0
    %30 = vmatpush.msra.mxu0 0.0
    %31 = vmatpush.msra.mxu0 0.0
    %32 = vmatpush.msra.mxu0 0.0
    %33 = vmatpush.msra.mxu0 0.0
    %34 = vmatpush.msra.mxu0 0.0
    %35 = vmatpush.msra.mxu0 0.0
    %36 = vmatpush.msra.mxu0 0.0
    %37 = vmatpush.msra.mxu0 0.0
    %38 = vmatpush.msra.mxu0 0.0
    %39 = vmatpush.msra.mxu0 0.0
    %40 = vmatpush.msra.mxu0 %v20
    %41 = vmatpush.msra.mxu0 %v19
    %42 = vmatpush.msra.mxu0 %v18
    %43 = vmatpush.msra.mxu0 %v17
    %44 = vmatmul.f32.gmra.mxu0 %v23
    %v45 = vpop.f32.mrf.mxu0
    %v46 = vadd.f32 0.0, %v45
    %47 = vmatmul.f32.gmra.mxu0 %v26
    %v48 = vpop.f32.mrf.mxu0
    %v49 = vadd.f32 0.0, %v48
    %50 = vdwg.mxu0
    %v51 = vld [vmem:[%s2] sm:$0xff]
    %vm52 = vcmask 64512
    %v54 = vsel %vm52, %v46, 0
    %v57 = vsel %vm52, %v49, 0
    %59 = vmatpush.msra.mxu0 0.0
    %60 = vmatpush.msra.mxu0 0.0
    %61 = vmatpush.msra.mxu0 0.0
    %62 = vmatpush.msra.mxu0 0.0
    %63 = vmatpush.msra.mxu0 0.0
    %64 = vmatpush.msra.mxu0 0.0
    %65 = vmatpush.msra.mxu0 0.0
    %66 = vmatpush.msra.mxu0 0.0
    %67 = vmatpush.msra.mxu0 0.0
    %68 = vmatpush.msra.mxu0 0.0
    %69 = vmatpush.msra.mxu0 0.0
    %70 = vmatpush.msra.mxu0 0.0
    %71 = vmatpush.msra.mxu0 0.0
    %72 = vmatpush.msra.mxu0 0.0
    %73 = vmatpush.msra.mxu0 0.0
    %74 = vmatpush.msra.mxu0 %v51
    %75 = vmatmul.f32.gmra.mxu0 %v54
    %v76 = vpop.f32.mrf.mxu0
    %v77 = vadd.f32 0.0, %v76
    %78 = vmatmul.f32.gmra.mxu0 %v57
    %v79 = vpop.f32.mrf.mxu0
    %v80 = vadd.f32 0.0, %v79
    %81 = vdwg.mxu0
    %v82 = vmul.f32 %v77, 0.25
    %v83 = vmul.f32 %v80, 0.25
    %84 = vst.msk [vmem:[#allocation2] sm:$0xff] %vm21, %v82
    %85 = vst.msk [vmem:[#allocation2 + $0x8] sm:$0xff] %vm21, %v83
    // Predicated region
    $region14: #{tpu_custom_call.1} parent=1 // pred_check
      _
    $region15: #{tpu_custom_call.1} parent=1 // pred_check_branch
      %87 = sbr.rel (0) target = $region17
    $region16: #{tpu_custom_call.1} parent=1 // pred_region
      %89 = vsyncadd [#allocation3], 0
      %s90 = sshll.u32 [#allocation2], 4
      %s91 = int_to_ptr.vmem [resolvable:$true] %s90
      %s92 = sshll.u32 %s3, 4
      %s93 = int_to_ptr.hbm [resolvable:$true] %s92
      %98 = dma.vmem_to_hbm [thread:$0]  %s91, 256, %s93, [#allocation3], 128, 128, 8
    $region17: #{tpu_custom_call.1} parent=1 // pred_fallthru
      _
    // Predicated region
    $region18: #{tpu_custom_call.1} parent=1 // pred_check
      _
    $region19: #{tpu_custom_call.1} parent=1 // pred_check_branch
      %100 = sbr.rel (0) target = $region21
    $region20: #{tpu_custom_call.1} parent=1 // pred_region
      %102 = dma.done [#allocation3], 256
    $region21: #{tpu_custom_call.1} parent=1 // pred_fallthru
      _
    %103 = vsyncpa [#allocation3], 1

// kernel: tpu_custom_call.1
$region0: #{tpu_custom_call.1}
  #allocation0 [shape = 'u32[]', space=smem, size = 0x4, offset = 0x4, fixed_abs, tag = 'smem constant byte address 0x4 - core index']
  #allocation1 [shape = 'u32[72,128]{1,0:T(1,128)}', space=vmem, size = 0x9000, scoped, tag = 'internal scratch']
  %s0 = inlined_call_operand.vmem [shape: f32[16,32], index: 0, kind: input, shape index: {}]
  %s1 = inlined_call_operand.vmem [shape: f32[32,8], index: 1, kind: input, shape index: {}]
  %s2 = inlined_call_operand.vmem [shape: f32[8,32], index: 2, kind: input, shape index: {}]
  %s3 = inlined_call_operand.hbm [shape: f32[16,32], index: 3, kind: output, shape index: {}]
  %s4 = sld [smem:[#allocation0]]
  $region22: #{tpu_custom_call.1} parent=0
    _
  %s6 = ssub.s32 1, %s4
  %s7 = scalar_select 0, %s6, %s4
  $region1: #{tpu_custom_call.1} parent=0
    #allocation2 [shape = 'u8[8192]{0}', space=vmem, size = 0x2000, scoped, tag = 'output window, operand 0, single buffered']
    #allocation3 [shape = 's32[1]{0}', space=sflag, size = 0x4, scoped, tag = 'scoped memory for tpu_custom_call.1']
    %8 = vsyncpa [#allocation3], 0
    // Predicated region
    $region2: #{tpu_custom_call.1} parent=1 // pred_check
      _
    $region3: #{tpu_custom_call.1} parent=1 // pred_check_branch
      %10 = sbr.rel (0) target = $region5
    $region4: #{tpu_custom_call.1} parent=1 // pred_region
      _
    $region5: #{tpu_custom_call.1} parent=1 // pred_fallthru
      _
    // Predicated region
    $region6: #{tpu_custom_call.1} parent=1 // pred_check
      _
    $region7: #{tpu_custom_call.1} parent=1 // pred_check_branch
      %12 = sbr.rel (0) target = $region9
    $region8: #{tpu_custom_call.1} parent=1 // pred_region
      _
    $region9: #{tpu_custom_call.1} parent=1 // pred_fallthru
      _
    // Predicated region
    $region10: #{tpu_custom_call.1} parent=1 // pred_check
      _
    $region11: #{tpu_custom_call.1} parent=1 // pred_check_branch
      %14 = sbr.rel (0) target = $region13
    $region12: #{tpu_custom_call.1} parent=1 // pred_region
      _
    $region13: #{tpu_custom_call.1} parent=1 // pred_fallthru
      _
    %v15 = vld [vmem:[%s0] sm:$0xff]
    %v16 = vld [vmem:[%s0 + $0x8] sm:$0xff]
    %v17 = vld [vmem:[%s1] sm:$0xff]
    %v18 = vld [vmem:[%s1 + $0x8] sm:$0xff]
    %v19 = vld [vmem:[%s1 + $0x10] sm:$0xff]
    %v20 = vld [vmem:[%s1 + $0x18] sm:$0xff]
    %vm21 = vcmask 261120
    %v23 = vsel %vm21, %v15, 0
    %v26 = vsel %vm21, %v16, 0
    %28 = vmatpush.msra.mxu0 0.0
    %29 = vmatpush.msra.mxu0 0.0
    %30 = vmatpush.msra.mxu0 0.0
    %31 = vmatpush.msra.mxu0 0.0
    %32 = vmatpush.msra.mxu0 0.0
    %33 = vmatpush.msra.mxu0 0.0
    %34 = vmatpush.msra.mxu0 0.0
    %35 = vmatpush.msra.mxu0 0.0
    %36 = vmatpush.msra.mxu0 0.0
    %37 = vmatpush.msra.mxu0 0.0
    %38 = vmatpush.msra.mxu0 0.0
    %39 = vmatpush.msra.mxu0 0.0
    %40 = vmatpush.msra.mxu0 %v20
    %41 = vmatpush.msra.mxu0 %v19
    %42 = vmatpush.msra.mxu0 %v18
    %43 = vmatpush.msra.mxu0 %v17
    %44 = vmatmul.f32.gmra.mxu0 %v23
    %v45 = vpop.f32.mrf.mxu0
    %v46 = vadd.f32 0.0, %v45
    %47 = vmatmul.f32.gmra.mxu0 %v26
    %v48 = vpop.f32.mrf.mxu0
    %v49 = vadd.f32 0.0, %v48
    %50 = vdwg.mxu0
    %v51 = vld [vmem:[%s2] sm:$0xff]
    %vm52 = vcmask 64512
    %v54 = vsel %vm52, %v46, 0
    %v57 = vsel %vm52, %v49, 0
    %59 = vmatpush.msra.mxu0 0.0
    %60 = vmatpush.msra.mxu0 0.0
    %61 = vmatpush.msra.mxu0 0.0
    %62 = vmatpush.msra.mxu0 0.0
    %63 = vmatpush.msra.mxu0 0.0
    %64 = vmatpush.msra.mxu0 0.0
    %65 = vmatpush.msra.mxu0 0.0
    %66 = vmatpush.msra.mxu0 0.0
    %67 = vmatpush.msra.mxu0 0.0
    %68 = vmatpush.msra.mxu0 0.0
    %69 = vmatpush.msra.mxu0 0.0
    %70 = vmatpush.msra.mxu0 0.0
    %71 = vmatpush.msra.mxu0 0.0
    %72 = vmatpush.msra.mxu0 0.0
    %73 = vmatpush.msra.mxu0 0.0
    %74 = vmatpush.msra.mxu0 %v51
    %75 = vmatmul.f32.gmra.mxu0 %v54
    %v76 = vpop.f32.mrf.mxu0
    %v77 = vadd.f32 0.0, %v76
    %78 = vmatmul.f32.gmra.mxu0 %v57
    %v79 = vpop.f32.mrf.mxu0
    %v80 = vadd.f32 0.0, %v79
    %81 = vdwg.mxu0
    %v82 = vmul.f32 %v77, 0.25
    %v83 = vmul.f32 %v80, 0.25
    %84 = vst.msk [vmem:[#allocation2] sm:$0xff] %vm21, %v82
    %85 = vst.msk [vmem:[#allocation2 + $0x8] sm:$0xff] %vm21, %v83
    // Predicated region
    $region14: #{tpu_custom_call.1} parent=1 // pred_check
      _
    $region15: #{tpu_custom_call.1} parent=1 // pred_check_branch
      %87 = sbr.rel (0) target = $region17
    $region16: #{tpu_custom_call.1} parent=1 // pred_region
      %89 = vsyncadd [#allocation3], 0
      %s90 = sshll.u32 [#allocation2], 4
      %s91 = int_to_ptr.vmem [resolvable:$true] %s90
      %s92 = sshll.u32 %s3, 4
      %s93 = int_to_ptr.hbm [resolvable:$true] %s92
      %98 = dma.vmem_to_hbm [thread:$0]  %s91, 256, %s93, [#allocation3], 128, 128, 8
    $region17: #{tpu_custom_call.1} parent=1 // pred_fallthru
      _
    // Predicated region
    $region18: #{tpu_custom_call.1} parent=1 // pred_check
      _
    $region19: #{tpu_custom_call.1} parent=1 // pred_check_branch
      %100 = sbr.rel (0) target = $region21
    $region20: #{tpu_custom_call.1} parent=1 // pred_region
      %102 = dma.done [#allocation3], 256
    $region21: #{tpu_custom_call.1} parent=1 // pred_fallthru
      _
    %103 = vsyncpa [#allocation3], 1

</llo_original>
